<compile_context>
chip_gen: v7x
topology: tpu7x:2x2x1
jax: 0.10.0
libtpu: 0.0.40
codegen_flags: <defaults>
</compile_context>

<pallas_src>
import jax
import jax.numpy as jnp
from jax.experimental import pallas as pl
from jax.experimental.pallas import tpu as pltpu


def _round_up(x, m):
    return ((x + m - 1) // m) * m


def _block_diag(w, pack):
    """(din, dout) -> (pack*din, pack*dout) block-diagonal with `pack` copies."""
    din, dout = w.shape
    eye = jnp.eye(pack, dtype=w.dtype)
    return jnp.einsum("pq,io->piqo", eye, w).reshape(pack * din, pack * dout)


def mlp_kernel(x_ref, w1_ref, b1_ref, w2_ref, b2_ref, o_ref):
    # x_ref : (TB, Din)  f32    w1_ref: (Din, H1) bf16    b1_ref: (1, H1) f32
    # w2_ref: (H1, H2)  bf16    b2_ref: (1, H2)  f32      o_ref : (TB, H2) f32
    # (In lane-packed mode Din/H1/H2 are PACK-x the logical sizes.)
    x = x_ref[...].astype(jnp.bfloat16)            # cast hidden under DMA pipeline
    h = jnp.dot(x, w1_ref[...], preferred_element_type=jnp.float32)
    h = jnp.maximum(h + b1_ref[...], 0.0)          # f32 bias + ReLU on the VPU
    y = jnp.dot(h.astype(jnp.bfloat16), w2_ref[...],
                preferred_element_type=jnp.float32)
    o_ref[...] = (y + b2_ref[...]).astype(o_ref.dtype)


def local_module_forward(x, w1, b1, w2, b2, *, tb=None):
    """Fused MLP forward: relu(x @ w1 + b1) @ w2 + b2.

    x : (B, D_in) f32     w1: (D_in, H1)   b1: (H1,) or (1, H1)
                          w2: (H1, H2)     b2: (H2,) or (1, H2)
    returns (B, H2) f32.  `tb` (optional) = batch rows per grid step.
    """
    B, D_in = x.shape
    H1 = w1.shape[-1]
    H2 = w2.shape[-1]
    b1 = jnp.asarray(b1, jnp.float32).reshape(1, H1)
    b2 = jnp.asarray(b2, jnp.float32).reshape(1, H2)

    # Lane-packing factor: fold `pack` batch rows into lanes so the output
    # block is 128 lanes wide (dense, unmasked vst) instead of H2=32.
    pack = 1
    if 0 < H2 < 128 and 128 % H2 == 0:
        cand = 128 // H2
        # Pack only if the batch divides and the block-diagonal weights stay
        # tiny (they grow by pack^2; irrelevant at this module's sizes).
        if B % cand == 0 and cand * cand * (D_in * H1 + H1 * H2) <= (2 << 20):
            pack = cand

    if pack > 1:
        # One-time parameter repack (tiny; precompute once in a real deployment).
        w1k = _block_diag(w1.astype(jnp.float32), pack).astype(jnp.bfloat16)
        w2k = _block_diag(w2.astype(jnp.float32), pack).astype(jnp.bfloat16)
        b1k = jnp.tile(b1, (1, pack))
        b2k = jnp.tile(b2, (1, pack))
        xk = x.reshape(B // pack, pack * D_in)     # free contiguous reshape
    else:
        w1k = w1.astype(jnp.bfloat16)
        w2k = w2.astype(jnp.bfloat16)
        b1k, b2k, xk = b1, b2, x

    rows, din_k = xk.shape
    h1_k = w1k.shape[1]
    h2_k = w2k.shape[1]

    # Batch tile (in packed rows): ~4 grid steps so each v7x TensorCore gets
    # >= 2 pipelined steps; capped at 2048 rows.  VMEM is never the limit at
    # these feature sizes on v5e / v6e / v7x.
    if tb is None:
        tbp = pl.cdiv(rows, 4)
    else:
        tbp = pl.cdiv(max(1, tb), pack)
    tbp = max(1, min(tbp, 2048))
    if rows <= 8:
        tbp = rows                                  # block equals full dim
    else:
        tbp = min(_round_up(tbp, 8), rows)          # sublane-aligned (or full)

    grid = (pl.cdiv(rows, tbp),)

    out = pl.pallas_call(
        mlp_kernel,
        out_shape=jax.ShapeDtypeStruct((rows, h2_k), jnp.float32),
        grid=grid,
        in_specs=[
            pl.BlockSpec((tbp, din_k), lambda i: (i, 0)),    # streams over batch
            pl.BlockSpec((din_k, h1_k), lambda i: (0, 0)),   # resident weights
            pl.BlockSpec((1, h1_k), lambda i: (0, 0)),       # resident bias
            pl.BlockSpec((h1_k, h2_k), lambda i: (0, 0)),    # resident weights
            pl.BlockSpec((1, h2_k), lambda i: (0, 0)),       # resident bias
        ],
        out_specs=pl.BlockSpec((tbp, h2_k), lambda i: (i, 0)),
        compiler_params=pltpu.CompilerParams(
            dimension_semantics=("parallel",),
        ),
    )(xk, w1k, b1k, w2k, b2k)

    return out.reshape(B, H2)


if __name__ == "__main__":
    key = jax.random.PRNGKey(0)
    k_x, k_w1, k_b1, k_w2, k_b2 = jax.random.split(key, 5)

    # LazyLinear infers in_features from the input; B=512 exercises the
    # lane-packed path and a 4-step pipelined grid.
    B, D_in, H1, H2 = 512, 32, 128, 32

    x = jax.random.normal(k_x, (B, D_in), dtype=jnp.float32)

    # Deterministic init (uniform, like torch.nn.Linear's default).
    lim1 = 1.0 / jnp.sqrt(D_in)
    w1 = jax.random.uniform(k_w1, (D_in, H1), jnp.float32, -lim1, lim1)
    b1 = jax.random.uniform(k_b1, (1, H1), jnp.float32, -lim1, lim1)
    lim2 = 1.0 / jnp.sqrt(H1)
    w2 = jax.random.uniform(k_w2, (H1, H2), jnp.float32, -lim2, lim2)
    b2 = jax.random.uniform(k_b2, (1, H2), jnp.float32, -lim2, lim2)

    out = local_module_forward(x, w1, b1, w2, b2)
    jax.block_until_ready(out)
    assert out.shape == (B, H2)

    # Reference with the same bf16 matmul operands / f32 accumulation.
    x_bf = x.astype(jnp.bfloat16)
    w1_bf = w1.astype(jnp.bfloat16)
    w2_bf = w2.astype(jnp.bfloat16)
    ref_h = jnp.maximum(
        jnp.dot(x_bf, w1_bf, preferred_element_type=jnp.float32) + b1, 0.0)
    ref = jnp.dot(ref_h.astype(jnp.bfloat16), w2_bf,
                  preferred_element_type=jnp.float32) + b2
    assert jnp.allclose(out, ref, atol=1e-2, rtol=1e-2)

    # Sanity check against the full-f32 reference (loose tol due to bf16 ops).
    ref_f32 = jnp.maximum(x @ w1 + b1, 0.0) @ w2 + b2
    assert jnp.allclose(out, ref_f32, atol=1e-1, rtol=1e-1)

    print("KERNEL_OK")
</pallas_src>

<mosaic_0001>
module attributes {stable_mosaic.version = 11 : i64} {
  func.func @mlp_kernel(%arg0: i32, %arg1: memref<32x128xf32, #tpu.memory_space<vmem>>, %arg2: memref<128x512xbf16, #tpu.memory_space<vmem>>, %arg3: memref<1x512xf32, #tpu.memory_space<vmem>>, %arg4: memref<512x128xbf16, #tpu.memory_space<vmem>>, %arg5: memref<1x128xf32, #tpu.memory_space<vmem>>, %arg6: memref<32x128xf32, #tpu.memory_space<vmem>>) attributes {dimension_semantics = [#tpu.dimension_semantics<parallel>], iteration_bounds = array<i64: 4>, scalar_prefetch = 0 : i64, scratch_operands = 0 : i64, tpu.core_type = #tpu.core_type<tc>, window_params = [{transform_indices = @transform_0, window_bounds = array<i64: 32, 128>}, {pipeline_mode = #tpu.pipeline_mode<synchronous>, transform_indices = @transform_1, window_bounds = array<i64: 128, 512>}, {pipeline_mode = #tpu.pipeline_mode<synchronous>, transform_indices = @transform_2, window_bounds = array<i64: 1, 512>}, {pipeline_mode = #tpu.pipeline_mode<synchronous>, transform_indices = @transform_3, window_bounds = array<i64: 512, 128>}, {pipeline_mode = #tpu.pipeline_mode<synchronous>, transform_indices = @transform_4, window_bounds = array<i64: 1, 128>}, {transform_indices = @transform_5, window_bounds = array<i64: 32, 128>}]} {
    %c0 = arith.constant 0 : index
    %c0_0 = arith.constant 0 : index
    %0 = vector.load %arg1[%c0, %c0_0] : memref<32x128xf32, #tpu.memory_space<vmem>>, vector<32x128xf32>
    %1 = arith.truncf %0 : vector<32x128xf32> to vector<32x128xbf16>
    %c0_1 = arith.constant 0 : index
    %c0_2 = arith.constant 0 : index
    %2 = vector.load %arg2[%c0_1, %c0_2] : memref<128x512xbf16, #tpu.memory_space<vmem>>, vector<128x512xbf16>
    %cst = arith.constant dense<0.000000e+00> : vector<32x512xf32>
    %3 = tpu.matmul %1, %2, %cst {dimension_numbers = #tpu.dot_dimension_numbers<[1], [0], [0], [1], [0, 0, 1, 1], [], []>} : vector<32x128xbf16>, vector<128x512xbf16>, vector<32x512xf32> -> vector<32x512xf32>
    %c0_3 = arith.constant 0 : index
    %c0_4 = arith.constant 0 : index
    %4 = vector.load %arg3[%c0_3, %c0_4] : memref<1x512xf32, #tpu.memory_space<vmem>>, vector<1x512xf32>
    %5 = vector.broadcast %4 : vector<1x512xf32> to vector<32x512xf32>
    %6 = arith.addf %3, %5 : vector<32x512xf32>
    %cst_5 = arith.constant 0.000000e+00 : f32
    %7 = vector.broadcast %cst_5 : f32 to vector<32x512xf32>
    %8 = arith.maximumf %6, %7 : vector<32x512xf32>
    %9 = arith.truncf %8 : vector<32x512xf32> to vector<32x512xbf16>
    %c0_6 = arith.constant 0 : index
    %c0_7 = arith.constant 0 : index
    %10 = vector.load %arg4[%c0_6, %c0_7] : memref<512x128xbf16, #tpu.memory_space<vmem>>, vector<512x128xbf16>
    %cst_8 = arith.constant dense<0.000000e+00> : vector<32x128xf32>
    %11 = tpu.matmul %9, %10, %cst_8 {dimension_numbers = #tpu.dot_dimension_numbers<[1], [0], [0], [1], [0, 0, 1, 1], [], []>} : vector<32x512xbf16>, vector<512x128xbf16>, vector<32x128xf32> -> vector<32x128xf32>
    %c0_9 = arith.constant 0 : index
    %c0_10 = arith.constant 0 : index
    %12 = vector.load %arg5[%c0_9, %c0_10] : memref<1x128xf32, #tpu.memory_space<vmem>>, vector<1x128xf32>
    %13 = vector.broadcast %12 : vector<1x128xf32> to vector<32x128xf32>
    %14 = arith.addf %11, %13 : vector<32x128xf32>
    %c0_11 = arith.constant 0 : index
    %c0_12 = arith.constant 0 : index
    %15 = vector.load %arg6[%c0_11, %c0_12] : memref<32x128xf32, #tpu.memory_space<vmem>>, vector<32x128xf32>
    tpu.vector_store %arg6[%c0_11, %c0_12], %14 {strides = array<i32>} : memref<32x128xf32, #tpu.memory_space<vmem>>, vector<32x128xf32>,
    return
  }
  func.func @transform_0(%arg0: i32) -> (i32, i32) {
    %c0_i32 = arith.constant 0 : i32
    %c0_i32_0 = arith.constant 0 : i32
    return %arg0, %c0_i32 : i32, i32
  }
  func.func @transform_1(%arg0: i32) -> (i32, i32) {
    %c0_i32 = arith.constant 0 : i32
    %c0_i32_0 = arith.constant 0 : i32
    %c0_i32_1 = arith.constant 0 : i32
    return %c0_i32, %c0_i32_0 : i32, i32
  }
  func.func @transform_2(%arg0: i32) -> (i32, i32) {
    %c0_i32 = arith.constant 0 : i32
    %c0_i32_0 = arith.constant 0 : i32
    %c0_i32_1 = arith.constant 0 : i32
    return %c0_i32, %c0_i32_0 : i32, i32
  }
  func.func @transform_3(%arg0: i32) -> (i32, i32) {
    %c0_i32 = arith.constant 0 : i32
    %c0_i32_0 = arith.constant 0 : i32
    %c0_i32_1 = arith.constant 0 : i32
    return %c0_i32, %c0_i32_0 : i32, i32
  }
  func.func @transform_4(%arg0: i32) -> (i32, i32) {
    %c0_i32 = arith.constant 0 : i32
    %c0_i32_0 = arith.constant 0 : i32
    %c0_i32_1 = arith.constant 0 : i32
    return %c0_i32, %c0_i32_0 : i32, i32
  }
  func.func @transform_5(%arg0: i32) -> (i32, i32) {
    %c0_i32 = arith.constant 0 : i32
    %c0_i32_0 = arith.constant 0 : i32
    return %arg0, %c0_i32 : i32, i32
  }
}

</mosaic_0001>

<llo_original>
// kernel: tpu_custom_call.1
$region0: #{tpu_custom_call.1}
  #allocation0 [shape = 'u32[]', space=smem, size = 0x4, offset = 0x4, fixed_abs, tag = 'smem constant byte address 0x4 - core index']
  #allocation1 [shape = 'u32[144,128]{1,0:T(1,128)}', space=vmem, size = 0x12000, scoped, tag = 'internal scratch']
  %s0 = inlined_call_operand.hbm [shape: f32[128,128], index: 0, kind: input, shape index: {}]
  %s1 = inlined_call_operand.hbm [shape: bf16[128,512], index: 1, kind: input, shape index: {}]
  %s2 = inlined_call_operand.vmem [shape: f32[1,512], index: 2, kind: input, shape index: {}]
  %s3 = inlined_call_operand.hbm [shape: bf16[512,128], index: 3, kind: input, shape index: {}]
  %s4 = inlined_call_operand.vmem [shape: f32[1,128], index: 4, kind: input, shape index: {}]
  %s5 = inlined_call_operand.hbm [shape: f32[128,128], index: 5, kind: output, shape index: {}]
  %s6 = sld [smem:[#allocation0]]
  $region65: #{tpu_custom_call.1} parent=0
    _
  %s8 = ssub.s32 1, %s6
  %s9 = scalar_select 0, %s8, %s6
  $region1: #{tpu_custom_call.1} parent=0
    #allocation2 [shape = 'u8[32768]{0}', space=vmem, size = 0x8000, scoped, tag = 'input window, operand 0']
    #allocation3 [shape = 's32[2]{0}', space=sflag, size = 0x8, scoped, tag = 'scoped memory for tpu_custom_call.1']
    #allocation4 [shape = 's32[2]{0}', space=sflag, size = 0x8, scoped, tag = 'scoped memory for tpu_custom_call.1']
    #allocation5 [shape = 'u8[131072]{0}', space=vmem, size = 0x20000, scoped, tag = 'input window, operand 1, single buffered']
    #allocation6 [shape = 's32[1]{0}', space=sflag, size = 0x4, scoped, tag = 'scoped memory for tpu_custom_call.1']
    #allocation7 [shape = 'u8[131072]{0}', space=vmem, size = 0x20000, scoped, tag = 'input window, operand 3, single buffered']
    #allocation8 [shape = 'u8[32768]{0}', space=vmem, size = 0x8000, scoped, tag = 'output window, operand 0']
    %10 = vsyncpa [#allocation3], 0
    %s11 = scalar_lea.sflag [#allocation3], 1
    %12 = vsyncpa %s11, 0
    %13 = vsyncpa [#allocation6], 0
    %14 = vsyncpa [#allocation4], 0
    %s15 = scalar_lea.sflag [#allocation4], 1
    %16 = vsyncpa %s15, 0
    loop: start=0, step=1, limit=6
    $region2: #{tpu_custom_call.1} parent=1 // loop_pre_header
      _
    $region3: #{tpu_custom_call.1} parent=1 // loop_header
      %s18 = sphi 0, %s22
      %p19 = scmp.ge.s32.totalorder %s18, 6
      %s28 = sphi 0, %s30
      %s31 = sphi 0, %s28
      %s32 = sphi 0, %s31
      %s48 = sphi 0, %s32
      %s52 = sphi 0, %s52
      %s54 = sphi 0, %s52
      %s55 = sphi 0, %s54
      %s69 = sphi 0, %s55
      %s73 = sphi 0, %s73
      %s75 = sphi 0, %s73
      %s76 = sphi 0, %s75
      %s90 = sphi 0, %s76
      %s94 = sphi 0, %s94
      %s96 = sphi 0, %s94
      %s97 = sphi 0, %s96
      %s111 = sphi 0, %s97
      %s115 = sphi 0, %s115
      %s117 = sphi 0, %s115
      %s118 = sphi 0, %s117
      %s132 = sphi 0, %s118
      %s138 = sphi 0, %s140
      %s141 = sphi 0, %s138
      %s142 = sphi 0, %s141
      %s158 = sphi 0, %s142
    $region4: #{tpu_custom_call.1} parent=1 // loop_header_branch
      %21 = sbr.rel (%p19) target = $region8
    $region5: #{tpu_custom_call.1} parent=1 // loop_body
      %s23 = ssub.s32 %s18, 1
      %s24 = ssub.s32 %s18, 2
      %s25 = sadd.s32 %s18, 1
      %s26 = ssub.s32 %s18, %s25
      %p27 = scmp.eq.s32.totalorder %s26, 0
      %s29 = sadd.s32 %s28, 1
      %s30 = scalar_select %p27, %s28, %s29
      %p33 = pneg %p27
      %p34 = scmp.eq.s32.totalorder %s18, 3
      %p35 = por %p33, %p34
      %p36 = scmp.ne.s32.totalorder %s28, %s31
      %p37 = scmp.eq.s32.totalorder %s18, 0
      %p38 = por %p36, %p37
      %p39 = scmp.ne.s32.totalorder %s28, %s31
      %p40 = scmp.eq.s32.totalorder %s23, 3
      %p41 = por %p39, %p40
      %p42 = scmp.ne.s32.totalorder %s31, %s32
      %p43 = scmp.eq.s32.totalorder %s23, 0
      %p44 = por %p42, %p43
      %p45 = scmp.ne.s32.totalorder %s31, %s32
      %p46 = scmp.eq.s32.totalorder %s24, 3
      %p47 = por %p45, %p46
      %p49 = scmp.ne.s32.totalorder %s32, %s48
      %p50 = scmp.eq.s32.totalorder %s24, 0
      %p51 = por %p49, %p50
      %s53 = sadd.s32 %s52, 1
      %p56 = scmp.eq.s32.totalorder %s18, 3
      %p57 = scmp.ne.s32.totalorder %s52, %s54
      %p58 = scmp.eq.s32.totalorder %s18, 0
      %p59 = por %p57, %p58
      %p60 = scmp.ne.s32.totalorder %s52, %s54
      %p61 = scmp.eq.s32.totalorder %s23, 3
      %p62 = por %p60, %p61
      %p63 = scmp.ne.s32.totalorder %s54, %s55
      %p64 = scmp.eq.s32.totalorder %s23, 0
      %p65 = por %p63, %p64
      %p66 = scmp.ne.s32.totalorder %s54, %s55
      %p67 = scmp.eq.s32.totalorder %s24, 3
      %p68 = por %p66, %p67
      %p70 = scmp.ne.s32.totalorder %s55, %s69
      %p71 = scmp.eq.s32.totalorder %s24, 0
      %p72 = por %p70, %p71
      %s74 = sadd.s32 %s73, 1
      %p77 = scmp.eq.s32.totalorder %s18, 3
      %p78 = scmp.ne.s32.totalorder %s73, %s75
      %p79 = scmp.eq.s32.totalorder %s18, 0
      %p80 = por %p78, %p79
      %p81 = scmp.ne.s32.totalorder %s73, %s75
      %p82 = scmp.eq.s32.totalorder %s23, 3
      %p83 = por %p81, %p82
      %p84 = scmp.ne.s32.totalorder %s75, %s76
      %p85 = scmp.eq.s32.totalorder %s23, 0
      %p86 = por %p84, %p85
      %p87 = scmp.ne.s32.totalorder %s75, %s76
      %p88 = scmp.eq.s32.totalorder %s24, 3
      %p89 = por %p87, %p88
      %p91 = scmp.ne.s32.totalorder %s76, %s90
      %p92 = scmp.eq.s32.totalorder %s24, 0
      %p93 = por %p91, %p92
      %s95 = sadd.s32 %s94, 1
      %p98 = scmp.eq.s32.totalorder %s18, 3
      %p99 = scmp.ne.s32.totalorder %s94, %s96
      %p100 = scmp.eq.s32.totalorder %s18, 0
      %p101 = por %p99, %p100
      %p102 = scmp.ne.s32.totalorder %s94, %s96
      %p103 = scmp.eq.s32.totalorder %s23, 3
      %p104 = por %p102, %p103
      %p105 = scmp.ne.s32.totalorder %s96, %s97
      %p106 = scmp.eq.s32.totalorder %s23, 0
      %p107 = por %p105, %p106
      %p108 = scmp.ne.s32.totalorder %s96, %s97
      %p109 = scmp.eq.s32.totalorder %s24, 3
      %p110 = por %p108, %p109
      %p112 = scmp.ne.s32.totalorder %s97, %s111
      %p113 = scmp.eq.s32.totalorder %s24, 0
      %p114 = por %p112, %p113
      %s116 = sadd.s32 %s115, 1
      %p119 = scmp.eq.s32.totalorder %s18, 3
      %p120 = scmp.ne.s32.totalorder %s115, %s117
      %p121 = scmp.eq.s32.totalorder %s18, 0
      %p122 = por %p120, %p121
      %p123 = scmp.ne.s32.totalorder %s115, %s117
      %p124 = scmp.eq.s32.totalorder %s23, 3
      %p125 = por %p123, %p124
      %p126 = scmp.ne.s32.totalorder %s117, %s118
      %p127 = scmp.eq.s32.totalorder %s23, 0
      %p128 = por %p126, %p127
      %p129 = scmp.ne.s32.totalorder %s117, %s118
      %p130 = scmp.eq.s32.totalorder %s24, 3
      %p131 = por %p129, %p130
      %p133 = scmp.ne.s32.totalorder %s118, %s132
      %p134 = scmp.eq.s32.totalorder %s24, 0
      %p135 = por %p133, %p134
      %s136 = ssub.s32 %s18, %s25
      %p137 = scmp.eq.s32.totalorder %s136, 0
      %s139 = sadd.s32 %s138, 1
      %s140 = scalar_select %p137, %s138, %s139
      %p143 = pneg %p137
      %p144 = scmp.eq.s32.totalorder %s18, 3
      %p145 = por %p143, %p144
      %p146 = scmp.ne.s32.totalorder %s138, %s141
      %p147 = scmp.eq.s32.totalorder %s18, 0
      %p148 = por %p146, %p147
      %p149 = scmp.ne.s32.totalorder %s138, %s141
      %p150 = scmp.eq.s32.totalorder %s23, 3
      %p151 = por %p149, %p150
      %p152 = scmp.ne.s32.totalorder %s141, %s142
      %p153 = scmp.eq.s32.totalorder %s23, 0
      %p154 = por %p152, %p153
      %p155 = scmp.ne.s32.totalorder %s141, %s142
      %p156 = scmp.eq.s32.totalorder %s24, 3
      %p157 = por %p155, %p156
      %p159 = scmp.ne.s32.totalorder %s142, %s158
      %p160 = scmp.eq.s32.totalorder %s24, 0
      %p161 = por %p159, %p160
      %p162 = scmp.le.s32.totalorder 1, %s18
      %p163 = scmp.lt.s32.totalorder %s18, 5
      %p164 = pnand %p162, %p163
      %p165 = pneg %p164
      // Predicated region
      $region9: #{tpu_custom_call.1} parent=5 // pred_check
        _
      $region10: #{tpu_custom_call.1} parent=5 // pred_check_branch
        %167 = sbr.rel (%p164) target = $region12
      $region11: #{tpu_custom_call.1} parent=5 // pred_region
        %s168 = ssub.s32 %s18, 1
        // Predicated region
        $region13: #{tpu_custom_call.1} parent=11 // pred_check
          %p169 = pneg %p65
        $region14: #{tpu_custom_call.1} parent=11 // pred_check_branch
          %171 = sbr.rel (%p169) target = $region16
        $region15: #{tpu_custom_call.1} parent=11 // pred_region
          %s173 = ssub.s32 4096, 4096
          %174 = vsyncadd [#allocation6], %s173
          %s175 = sshll.u32 [#allocation5], 4
          %s176 = int_to_ptr.vmem [resolvable:$true] %s175
          %181 = dma.hbm_to_vmem [thread:$0]  %s1, 4096, %s176, [#allocation6], 256, 256, 16
        $region16: #{tpu_custom_call.1} parent=11 // pred_fallthru
          _
        // Predicated region
        $region17: #{tpu_custom_call.1} parent=11 // pred_check
          %p182 = pneg %p86
        $region18: #{tpu_custom_call.1} parent=11 // pred_check_branch
          %184 = sbr.rel (%p182) target = $region20
        $region19: #{tpu_custom_call.1} parent=11 // pred_region
          _
        $region20: #{tpu_custom_call.1} parent=11 // pred_fallthru
          _
        // Predicated region
        $region21: #{tpu_custom_call.1} parent=11 // pred_check
          %p185 = pneg %p107
        $region22: #{tpu_custom_call.1} parent=11 // pred_check_branch
          %187 = sbr.rel (%p185) target = $region24
        $region23: #{tpu_custom_call.1} parent=11 // pred_region
          %s189 = ssub.s32 4096, 4096
          %190 = vsyncadd [#allocation6], %s189
          %s191 = sshll.u32 [#allocation7], 4
          %s192 = int_to_ptr.vmem [resolvable:$true] %s191
          %197 = dma.hbm_to_vmem [thread:$0]  %s3, 4096, %s192, [#allocation6], 64, 64, 4
        $region24: #{tpu_custom_call.1} parent=11 // pred_fallthru
          _
        // Predicated region
        $region25: #{tpu_custom_call.1} parent=11 // pred_check
          %p198 = pneg %p128
        $region26: #{tpu_custom_call.1} parent=11 // pred_check_branch
          %200 = sbr.rel (%p198) target = $region28
        $region27: #{tpu_custom_call.1} parent=11 // pred_region
          _
        $region28: #{tpu_custom_call.1} parent=11 // pred_fallthru
          _
      $region12: #{tpu_custom_call.1} parent=5 // pred_fallthru
        _
      %p201 = scmp.lt.s32.totalorder %s18, 4
      // Predicated region
      $region29: #{tpu_custom_call.1} parent=5 // pred_check
        %p202 = pneg %p201
      $region30: #{tpu_custom_call.1} parent=5 // pred_check_branch
        %204 = sbr.rel (%p202) target = $region32
      $region31: #{tpu_custom_call.1} parent=5 // pred_region
        // Predicated region
        $region33: #{tpu_custom_call.1} parent=31 // pred_check
          %p205 = pneg %p38
        $region34: #{tpu_custom_call.1} parent=31 // pred_check_branch
          %207 = sbr.rel (%p205) target = $region36
        $region35: #{tpu_custom_call.1} parent=31 // pred_region
          %s208 = sand.u32 %s28, 1
          %s209 = scalar_lea.sflag [#allocation3], %s208
          %s210 = sand.u32 %s28, 1
          %s211 = smul.addr %s210, 32
          %s212 = scalar_lea.vmem [#allocation2], %s211
          %s213 = smul.u32 4, %s18
          %s215 = ssub.s32 512, 512
          %216 = vsyncadd %s209, %s215
          %s217 = smul.addr %s213, 128
          %s218 = scalar_lea.hbm %s0, %s217
          %s219 = sshll.u32 %s212, 4
          %s220 = int_to_ptr.vmem [resolvable:$true] %s219
          %225 = dma.hbm_to_vmem [thread:$0]  %s218, 512, %s220, %s209, 128, 128, 8
        $region36: #{tpu_custom_call.1} parent=31 // pred_fallthru
          _
      $region32: #{tpu_custom_call.1} parent=5 // pred_fallthru
        _
      %p226 = scmp.le.s32.totalorder 1, %s18
      %p227 = scmp.lt.s32.totalorder %s18, 5
      %p228 = pnand %p226, %p227
      %p229 = pneg %p228
      // Predicated region
      $region37: #{tpu_custom_call.1} parent=5 // pred_check
        _
      $region38: #{tpu_custom_call.1} parent=5 // pred_check_branch
        %231 = sbr.rel (%p228) target = $region40
      $region39: #{tpu_custom_call.1} parent=5 // pred_region
        %s232 = ssub.s32 %s18, 1
        %s233 = sand.u32 %s31, 1
        %s234 = scalar_lea.sflag [#allocation3], %s233
        %s235 = sand.u32 %s31, 1
        %s236 = smul.addr %s235, 32
        %s237 = scalar_lea.vmem [#allocation2], %s236
        // Predicated region
        $region41: #{tpu_custom_call.1} parent=39 // pred_check
          %p238 = pneg %p44
        $region42: #{tpu_custom_call.1} parent=39 // pred_check_branch
          %240 = sbr.rel (%p238) target = $region44
        $region43: #{tpu_custom_call.1} parent=39 // pred_region
          %241 = dma.done %s234, 512
        $region44: #{tpu_custom_call.1} parent=39 // pred_fallthru
          _
        // Predicated region
        $region45: #{tpu_custom_call.1} parent=39 // pred_check
          %p242 = pneg %p65
        $region46: #{tpu_custom_call.1} parent=39 // pred_check_branch
          %244 = sbr.rel (%p242) target = $region48
        $region47: #{tpu_custom_call.1} parent=39 // pred_region
          %245 = dma.done [#allocation6], 4096
        $region48: #{tpu_custom_call.1} parent=39 // pred_fallthru
          _
        // Predicated region
        $region49: #{tpu_custom_call.1} parent=39 // pred_check
          %p246 = pneg %p107
        $region50: #{tpu_custom_call.1} parent=39 // pred_check_branch
          %248 = sbr.rel (%p246) target = $region52
        $region51: #{tpu_custom_call.1} parent=39 // pred_region
          %249 = dma.done [#allocation6], 4096
        $region52: #{tpu_custom_call.1} parent=39 // pred_fallthru
          _
        %s250 = sand.u32 %s31, 1
        %s251 = scalar_lea.sflag [#allocation3], %s250
        %s252 = sand.u32 %s31, 1
        %s253 = smul.addr %s252, 32
        %s254 = scalar_lea.vmem [#allocation2], %s253
        %p255 = pneg %p44
        %p256 = pneg %p41
        %p257 = pneg %p65
        %p258 = pneg %p62
        %p259 = pneg %p86
        %p260 = pneg %p83
        %p261 = pneg %p107
        %p262 = pneg %p104
        %p263 = pneg %p128
        %p264 = pneg %p125
        %p265 = pneg %p154
        %p266 = pneg %p151
        %s267 = sand.u32 %s141, 1
        %s268 = scalar_lea.sflag [#allocation4], %s267
        %s269 = sand.u32 %s141, 1
        %s270 = smul.addr %s269, 32
        %s271 = scalar_lea.vmem [#allocation8], %s270
        %s272 = smul.u32 4, %s23
        %s273 = smul.u32 4, %s23
        %v275 = vld [vmem:[%s237] sm:$0xff]
        %v276 = vld [vmem:[%s237 + $0x8] sm:$0xff]
        %v277 = vld [vmem:[%s237 + $0x10] sm:$0xff]
        %v278 = vld [vmem:[%s237 + $0x18] sm:$0xff]
        %v279 = vpack.c.bf16 %v276, %v275
        %v280 = vpack.c.bf16 %v278, %v277
        %v281 = vld [vmem:[#allocation5] sm:$0xff]
        %v282 = vld [vmem:[#allocation5 + $0x8] sm:$0xff]
        %v283 = vld [vmem:[#allocation5 + $0x10] sm:$0xff]
        %v284 = vld [vmem:[#allocation5 + $0x18] sm:$0xff]
        %v285 = vld [vmem:[#allocation5 + $0x20] sm:$0xff]
        %v286 = vld [vmem:[#allocation5 + $0x28] sm:$0xff]
        %v287 = vld [vmem:[#allocation5 + $0x30] sm:$0xff]
        %v288 = vld [vmem:[#allocation5 + $0x38] sm:$0xff]
        %v289 = vld [vmem:[#allocation5 + $0x40] sm:$0xff]
        %v290 = vld [vmem:[#allocation5 + $0x48] sm:$0xff]
        %v291 = vld [vmem:[#allocation5 + $0x50] sm:$0xff]
        %v292 = vld [vmem:[#allocation5 + $0x58] sm:$0xff]
        %v293 = vld [vmem:[#allocation5 + $0x60] sm:$0xff]
        %v294 = vld [vmem:[#allocation5 + $0x68] sm:$0xff]
        %v295 = vld [vmem:[#allocation5 + $0x70] sm:$0xff]
        %v296 = vld [vmem:[#allocation5 + $0x78] sm:$0xff]
        %v297 = vld [vmem:[#allocation5 + $0x80] sm:$0xff]
        %v298 = vld [vmem:[#allocation5 + $0x88] sm:$0xff]
        %v299 = vld [vmem:[#allocation5 + $0x90] sm:$0xff]
        %v300 = vld [vmem:[#allocation5 + $0x98] sm:$0xff]
        %v301 = vld [vmem:[#allocation5 + $0xa0] sm:$0xff]
        %v302 = vld [vmem:[#allocation5 + $0xa8] sm:$0xff]
        %v303 = vld [vmem:[#allocation5 + $0xb0] sm:$0xff]
        %v304 = vld [vmem:[#allocation5 + $0xb8] sm:$0xff]
        %v305 = vld [vmem:[#allocation5 + $0xc0] sm:$0xff]
        %v306 = vld [vmem:[#allocation5 + $0xc8] sm:$0xff]
        %v307 = vld [vmem:[#allocation5 + $0xd0] sm:$0xff]
        %v308 = vld [vmem:[#allocation5 + $0xd8] sm:$0xff]
        %v309 = vld [vmem:[#allocation5 + $0xe0] sm:$0xff]
        %v310 = vld [vmem:[#allocation5 + $0xe8] sm:$0xff]
        %v311 = vld [vmem:[#allocation5 + $0xf0] sm:$0xff]
        %v312 = vld [vmem:[#allocation5 + $0xf8] sm:$0xff]
        %v313 = vld [vmem:[%s2] sm:$0xf]
        %v315 = vlaneseq
        %v316 = vshrl.u32 %v315, 7
        %v317 = vsub.s32 0, %v316
        %v318 = vrot.slane %v313, %v317
        %v319 = vlaneseq
        %v320 = vshrl.u32 %v319, 7
        %v321 = vsub.s32 1, %v320
        %v322 = vrot.slane %v313, %v321
        %v323 = vlaneseq
        %v324 = vshrl.u32 %v323, 7
        %v325 = vsub.s32 2, %v324
        %v326 = vrot.slane %v313, %v325
        %v327 = vlaneseq
        %v328 = vshrl.u32 %v327, 7
        %v329 = vsub.s32 3, %v328
        %v330 = vrot.slane %v313, %v329
        %v367 = vunpack.c.l.b16 %v281
        %v368 = vunpack.c.h.b16 %v281
        %v369 = vunpack.c.l.b16 %v282
        %v370 = vunpack.c.h.b16 %v282
        %v371 = vunpack.c.l.b16 %v283
        %v372 = vunpack.c.h.b16 %v283
        %v373 = vunpack.c.l.b16 %v284
        %v374 = vunpack.c.h.b16 %v284
        %v375 = vunpack.c.l.b16 %v285
        %v376 = vunpack.c.h.b16 %v285
        %v377 = vunpack.c.l.b16 %v286
        %v378 = vunpack.c.h.b16 %v286
        %v379 = vunpack.c.l.b16 %v287
        %v380 = vunpack.c.h.b16 %v287
        %v381 = vunpack.c.l.b16 %v288
        %v382 = vunpack.c.h.b16 %v288
        %v383 = vunpack.c.l.b16 %v289
        %v384 = vunpack.c.h.b16 %v289
        %v385 = vunpack.c.l.b16 %v290
        %v386 = vunpack.c.h.b16 %v290
        %v387 = vunpack.c.l.b16 %v291
        %v388 = vunpack.c.h.b16 %v291
        %v389 = vunpack.c.l.b16 %v292
        %v390 = vunpack.c.h.b16 %v292
        %v391 = vunpack.c.l.b16 %v293
        %v392 = vunpack.c.h.b16 %v293
        %v393 = vunpack.c.l.b16 %v294
        %v394 = vunpack.c.h.b16 %v294
        %v395 = vunpack.c.l.b16 %v295
        %v396 = vunpack.c.h.b16 %v295
        %v397 = vunpack.c.l.b16 %v296
        %v398 = vunpack.c.h.b16 %v296
        %v399 = vunpack.c.l.b16 %v297
        %v400 = vunpack.c.h.b16 %v297
        %v401 = vunpack.c.l.b16 %v298
        %v402 = vunpack.c.h.b16 %v298
        %v403 = vunpack.c.l.b16 %v299
        %v404 = vunpack.c.h.b16 %v299
        %v405 = vunpack.c.l.b16 %v300
        %v406 = vunpack.c.h.b16 %v300
        %v407 = vunpack.c.l.b16 %v301
        %v408 = vunpack.c.h.b16 %v301
        %v409 = vunpack.c.l.b16 %v302
        %v410 = vunpack.c.h.b16 %v302
        %v411 = vunpack.c.l.b16 %v303
        %v412 = vunpack.c.h.b16 %v303
        %v413 = vunpack.c.l.b16 %v304
        %v414 = vunpack.c.h.b16 %v304
        %v415 = vunpack.c.l.b16 %v305
        %v416 = vunpack.c.h.b16 %v305
        %v417 = vunpack.c.l.b16 %v306
        %v418 = vunpack.c.h.b16 %v306
        %v419 = vunpack.c.l.b16 %v307
        %v420 = vunpack.c.h.b16 %v307
        %v421 = vunpack.c.l.b16 %v308
        %v422 = vunpack.c.h.b16 %v308
        %v423 = vunpack.c.l.b16 %v309
        %v424 = vunpack.c.h.b16 %v309
        %v425 = vunpack.c.l.b16 %v310
        %v426 = vunpack.c.h.b16 %v310
        %v427 = vunpack.c.l.b16 %v311
        %v428 = vunpack.c.h.b16 %v311
        %v429 = vunpack.c.l.b16 %v312
        %v430 = vunpack.c.h.b16 %v312
        %v431 = vpack.c.b16 %v371, %v367
        %v432 = vpack.c.b16 %v372, %v368
        %v433 = vpack.c.b16 %v373, %v369
        %v434 = vpack.c.b16 %v374, %v370
        %v435 = vpack.c.b16 %v379, %v375
        %v436 = vpack.c.b16 %v380, %v376
        %v437 = vpack.c.b16 %v381, %v377
        %v438 = vpack.c.b16 %v382, %v378
        %v439 = vpack.c.b16 %v387, %v383
        %v440 = vpack.c.b16 %v388, %v384
        %v441 = vpack.c.b16 %v389, %v385
        %v442 = vpack.c.b16 %v390, %v386
        %v443 = vpack.c.b16 %v395, %v391
        %v444 = vpack.c.b16 %v396, %v392
        %v445 = vpack.c.b16 %v397, %v393
        %v446 = vpack.c.b16 %v398, %v394
        %v447 = vpack.c.b16 %v403, %v399
        %v448 = vpack.c.b16 %v404, %v400
        %v449 = vpack.c.b16 %v405, %v401
        %v450 = vpack.c.b16 %v406, %v402
        %v451 = vpack.c.b16 %v411, %v407
        %v452 = vpack.c.b16 %v412, %v408
        %v453 = vpack.c.b16 %v413, %v409
        %v454 = vpack.c.b16 %v414, %v410
        %v455 = vpack.c.b16 %v419, %v415
        %v456 = vpack.c.b16 %v420, %v416
        %v457 = vpack.c.b16 %v421, %v417
        %v458 = vpack.c.b16 %v422, %v418
        %v459 = vpack.c.b16 %v427, %v423
        %v460 = vpack.c.b16 %v428, %v424
        %v461 = vpack.c.b16 %v429, %v425
        %v462 = vpack.c.b16 %v430, %v426
        %495 = vmatprep.subr.bf16.mxu0 %v432
        %496 = vmatpush1.bf16.msra.mxu0 %v431
        %497 = vmatprep.subr.bf16.mxu0 %v436
        %498 = vmatpush1.bf16.msra.mxu0 %v435
        %499 = vmatprep.subr.bf16.mxu0 %v440
        %500 = vmatpush1.bf16.msra.mxu0 %v439
        %501 = vmatprep.subr.bf16.mxu0 %v444
        %502 = vmatpush1.bf16.msra.mxu0 %v443
        %503 = vmatprep.subr.bf16.mxu0 %v448
        %504 = vmatpush1.bf16.msra.mxu0 %v447
        %505 = vmatprep.subr.bf16.mxu0 %v452
        %506 = vmatpush1.bf16.msra.mxu0 %v451
        %507 = vmatprep.subr.bf16.mxu0 %v456
        %508 = vmatpush1.bf16.msra.mxu0 %v455
        %509 = vmatprep.subr.bf16.mxu0 %v460
        %510 = vmatpush1.bf16.msra.mxu0 %v459
        %511 = vmatprep.subr.bf16.mxu0 0
        %512 = vmatpush1.bf16.msra.mxu0 0
        %513 = vmatprep.subr.bf16.mxu0 0
        %514 = vmatpush1.bf16.msra.mxu0 0
        %515 = vmatprep.subr.bf16.mxu0 0
        %516 = vmatpush1.bf16.msra.mxu0 0
        %517 = vmatprep.subr.bf16.mxu0 0
        %518 = vmatpush1.bf16.msra.mxu0 0
        %519 = vmatprep.subr.bf16.mxu0 0
        %520 = vmatpush1.bf16.msra.mxu0 0
        %521 = vmatprep.subr.bf16.mxu0 0
        %522 = vmatpush1.bf16.msra.mxu0 0
        %523 = vmatprep.subr.bf16.mxu0 0
        %524 = vmatpush1.bf16.msra.mxu0 0
        %525 = vmatprep.subr.bf16.mxu0 0
        %526 = vmatpush1.bf16.msra.mxu0 0
        %527 = vmatprep.mubr.bf16.mxu0 0
        %528 = vmatmul.mubr.bf16.gmra.mrb[0].mxu0 %v279
        %v529 = vpop.f32.mrb[0].mxu0
        %v530 = vadd.f32 %v318, %v529
        %v531 = vpop.f32.mrb[0].mxu0
        %v532 = vadd.f32 %v322, %v531
        %v533 = vpop.f32.mrb[0].mxu0
        %v534 = vadd.f32 %v318, %v533
        %v535 = vpop.f32.mrb[0].mxu0
        %v536 = vadd.f32 %v322, %v535
        %537 = vmatprep.mubr.bf16.mxu0 0
        %538 = vmatmul.mubr.bf16.gmra.mrb[0].mxu0 %v280
        %v539 = vpop.f32.mrb[0].mxu0
        %v540 = vadd.f32 %v318, %v539
        %v541 = vpop.f32.mrb[0].mxu0
        %v542 = vadd.f32 %v322, %v541
        %v543 = vpop.f32.mrb[0].mxu0
        %v544 = vadd.f32 %v318, %v543
        %v545 = vpop.f32.mrb[0].mxu0
        %v546 = vadd.f32 %v322, %v545
        %547 = vdwg.mxu0
        %548 = vmatprep.subr.bf16.mxu0 %v434
        %549 = vmatpush1.bf16.msra.mxu0 %v433
        %550 = vmatprep.subr.bf16.mxu0 %v438
        %551 = vmatpush1.bf16.msra.mxu0 %v437
        %552 = vmatprep.subr.bf16.mxu0 %v442
        %553 = vmatpush1.bf16.msra.mxu0 %v441
        %554 = vmatprep.subr.bf16.mxu0 %v446
        %555 = vmatpush1.bf16.msra.mxu0 %v445
        %556 = vmatprep.subr.bf16.mxu0 %v450
        %557 = vmatpush1.bf16.msra.mxu0 %v449
        %558 = vmatprep.subr.bf16.mxu0 %v454
        %559 = vmatpush1.bf16.msra.mxu0 %v453
        %560 = vmatprep.subr.bf16.mxu0 %v458
        %561 = vmatpush1.bf16.msra.mxu0 %v457
        %562 = vmatprep.subr.bf16.mxu0 %v462
        %563 = vmatpush1.bf16.msra.mxu0 %v461
        %564 = vmatprep.subr.bf16.mxu0 0
        %565 = vmatpush1.bf16.msra.mxu0 0
        %566 = vmatprep.subr.bf16.mxu0 0
        %567 = vmatpush1.bf16.msra.mxu0 0
        %568 = vmatprep.subr.bf16.mxu0 0
        %569 = vmatpush1.bf16.msra.mxu0 0
        %570 = vmatprep.subr.bf16.mxu0 0
        %571 = vmatpush1.bf16.msra.mxu0 0
        %572 = vmatprep.subr.bf16.mxu0 0
        %573 = vmatpush1.bf16.msra.mxu0 0
        %574 = vmatprep.subr.bf16.mxu0 0
        %575 = vmatpush1.bf16.msra.mxu0 0
        %576 = vmatprep.subr.bf16.mxu0 0
        %577 = vmatpush1.bf16.msra.mxu0 0
        %578 = vmatprep.subr.bf16.mxu0 0
        %579 = vmatpush1.bf16.msra.mxu0 0
        %580 = vmatprep.mubr.bf16.mxu0 0
        %581 = vmatmul.mubr.bf16.gmra.mrb[0].mxu0 %v279
        %v582 = vpop.f32.mrb[0].mxu0
        %v583 = vadd.f32 %v326, %v582
        %v584 = vpop.f32.mrb[0].mxu0
        %v585 = vadd.f32 %v330, %v584
        %v586 = vpop.f32.mrb[0].mxu0
        %v587 = vadd.f32 %v326, %v586
        %v588 = vpop.f32.mrb[0].mxu0
        %v589 = vadd.f32 %v330, %v588
        %590 = vmatprep.mubr.bf16.mxu0 0
        %591 = vmatmul.mubr.bf16.gmra.mrb[0].mxu0 %v280
        %v592 = vpop.f32.mrb[0].mxu0
        %v593 = vadd.f32 %v326, %v592
        %v594 = vpop.f32.mrb[0].mxu0
        %v595 = vadd.f32 %v330, %v594
        %v596 = vpop.f32.mrb[0].mxu0
        %v597 = vadd.f32 %v326, %v596
        %v598 = vpop.f32.mrb[0].mxu0
        %v599 = vadd.f32 %v330, %v598
        %600 = vdwg.mxu0
        %v601 = vmax.f32 %v530, 0.0
        %v602 = vmax.f32 %v532, 0.0
        %v603 = vmax.f32 %v583, 0.0
        %v604 = vmax.f32 %v585, 0.0
        %v605 = vmax.f32 %v534, 0.0
        %v606 = vmax.f32 %v536, 0.0
        %v607 = vmax.f32 %v587, 0.0
        %v608 = vmax.f32 %v589, 0.0
        %v609 = vmax.f32 %v540, 0.0
        %v610 = vmax.f32 %v542, 0.0
        %v611 = vmax.f32 %v593, 0.0
        %v612 = vmax.f32 %v595, 0.0
        %v613 = vmax.f32 %v544, 0.0
        %v614 = vmax.f32 %v546, 0.0
        %v615 = vmax.f32 %v597, 0.0
        %v616 = vmax.f32 %v599, 0.0
        %v617 = vpack.c.bf16 %v605, %v601
        %v618 = vpack.c.bf16 %v606, %v602
        %v619 = vpack.c.bf16 %v607, %v603
        %v620 = vpack.c.bf16 %v608, %v604
        %v621 = vpack.c.bf16 %v613, %v609
        %v622 = vpack.c.bf16 %v614, %v610
        %v623 = vpack.c.bf16 %v615, %v611
        %v624 = vpack.c.bf16 %v616, %v612
        %v625 = vld [vmem:[#allocation7] sm:$0xf]
        %v626 = vld [vmem:[#allocation7 + $0x4] sm:$0xf]
        %v627 = vld [vmem:[#allocation7 + $0x8] sm:$0xf]
        %v628 = vld [vmem:[#allocation7 + $0xc] sm:$0xf]
        %v629 = vld [vmem:[#allocation7 + $0x10] sm:$0xf]
        %v630 = vld [vmem:[#allocation7 + $0x14] sm:$0xf]
        %v631 = vld [vmem:[#allocation7 + $0x18] sm:$0xf]
        %v632 = vld [vmem:[#allocation7 + $0x1c] sm:$0xf]
        %v633 = vld [vmem:[#allocation7 + $0x20] sm:$0xf]
        %v634 = vld [vmem:[#allocation7 + $0x24] sm:$0xf]
        %v635 = vld [vmem:[#allocation7 + $0x28] sm:$0xf]
        %v636 = vld [vmem:[#allocation7 + $0x2c] sm:$0xf]
        %v637 = vld [vmem:[#allocation7 + $0x30] sm:$0xf]
        %v638 = vld [vmem:[#allocation7 + $0x34] sm:$0xf]
        %v639 = vld [vmem:[#allocation7 + $0x38] sm:$0xf]
        %v640 = vld [vmem:[#allocation7 + $0x3c] sm:$0xf]
        %v641 = vld [vmem:[#allocation7 + $0x40] sm:$0xf]
        %v642 = vld [vmem:[#allocation7 + $0x44] sm:$0xf]
        %v643 = vld [vmem:[#allocation7 + $0x48] sm:$0xf]
        %v644 = vld [vmem:[#allocation7 + $0x4c] sm:$0xf]
        %v645 = vld [vmem:[#allocation7 + $0x50] sm:$0xf]
        %v646 = vld [vmem:[#allocation7 + $0x54] sm:$0xf]
        %v647 = vld [vmem:[#allocation7 + $0x58] sm:$0xf]
        %v648 = vld [vmem:[#allocation7 + $0x5c] sm:$0xf]
        %v649 = vld [vmem:[#allocation7 + $0x60] sm:$0xf]
        %v650 = vld [vmem:[#allocation7 + $0x64] sm:$0xf]
        %v651 = vld [vmem:[#allocation7 + $0x68] sm:$0xf]
        %v652 = vld [vmem:[#allocation7 + $0x6c] sm:$0xf]
        %v653 = vld [vmem:[#allocation7 + $0x70] sm:$0xf]
        %v654 = vld [vmem:[#allocation7 + $0x74] sm:$0xf]
        %v655 = vld [vmem:[#allocation7 + $0x78] sm:$0xf]
        %v656 = vld [vmem:[#allocation7 + $0x7c] sm:$0xf]
        %v657 = vld [vmem:[#allocation7 + $0x80] sm:$0xf]
        %v658 = vld [vmem:[#allocation7 + $0x84] sm:$0xf]
        %v659 = vld [vmem:[#allocation7 + $0x88] sm:$0xf]
        %v660 = vld [vmem:[#allocation7 + $0x8c] sm:$0xf]
        %v661 = vld [vmem:[#allocation7 + $0x90] sm:$0xf]
        %v662 = vld [vmem:[#allocation7 + $0x94] sm:$0xf]
        %v663 = vld [vmem:[#allocation7 + $0x98] sm:$0xf]
        %v664 = vld [vmem:[#allocation7 + $0x9c] sm:$0xf]
        %v665 = vld [vmem:[#allocation7 + $0xa0] sm:$0xf]
        %v666 = vld [vmem:[#allocation7 + $0xa4] sm:$0xf]
        %v667 = vld [vmem:[#allocation7 + $0xa8] sm:$0xf]
        %v668 = vld [vmem:[#allocation7 + $0xac] sm:$0xf]
        %v669 = vld [vmem:[#allocation7 + $0xb0] sm:$0xf]
        %v670 = vld [vmem:[#allocation7 + $0xb4] sm:$0xf]
        %v671 = vld [vmem:[#allocation7 + $0xb8] sm:$0xf]
        %v672 = vld [vmem:[#allocation7 + $0xbc] sm:$0xf]
        %v673 = vld [vmem:[#allocation7 + $0xc0] sm:$0xf]
        %v674 = vld [vmem:[#allocation7 + $0xc4] sm:$0xf]
        %v675 = vld [vmem:[#allocation7 + $0xc8] sm:$0xf]
        %v676 = vld [vmem:[#allocation7 + $0xcc] sm:$0xf]
        %v677 = vld [vmem:[#allocation7 + $0xd0] sm:$0xf]
        %v678 = vld [vmem:[#allocation7 + $0xd4] sm:$0xf]
        %v679 = vld [vmem:[#allocation7 + $0xd8] sm:$0xf]
        %v680 = vld [vmem:[#allocation7 + $0xdc] sm:$0xf]
        %v681 = vld [vmem:[#allocation7 + $0xe0] sm:$0xf]
        %v682 = vld [vmem:[#allocation7 + $0xe4] sm:$0xf]
        %v683 = vld [vmem:[#allocation7 + $0xe8] sm:$0xf]
        %v684 = vld [vmem:[#allocation7 + $0xec] sm:$0xf]
        %v685 = vld [vmem:[#allocation7 + $0xf0] sm:$0xf]
        %v686 = vld [vmem:[#allocation7 + $0xf4] sm:$0xf]
        %v687 = vld [vmem:[#allocation7 + $0xf8] sm:$0xf]
        %v688 = vld [vmem:[#allocation7 + $0xfc] sm:$0xf]
        %v689 = vld [vmem:[%s4] sm:$0x1]
        %v691 = vlaneseq
        %v692 = vshrl.u32 %v691, 7
        %v693 = vsub.s32 0, %v692
        %v694 = vrot.slane %v689, %v693
        %v760 = vunpack.c.l.b16 %v625
        %v761 = vunpack.c.l.b16 %v626
        %v762 = vunpack.c.l.b16 %v627
        %v763 = vunpack.c.l.b16 %v628
        %v764 = vunpack.c.l.b16 %v629
        %v765 = vunpack.c.l.b16 %v630
        %v766 = vunpack.c.l.b16 %v631
        %v767 = vunpack.c.l.b16 %v632
        %v768 = vunpack.c.l.b16 %v633
        %v769 = vunpack.c.l.b16 %v634
        %v770 = vunpack.c.l.b16 %v635
        %v771 = vunpack.c.l.b16 %v636
        %v772 = vunpack.c.l.b16 %v637
        %v773 = vunpack.c.l.b16 %v638
        %v774 = vunpack.c.l.b16 %v639
        %v775 = vunpack.c.l.b16 %v640
        %v776 = vunpack.c.l.b16 %v641
        %v777 = vunpack.c.l.b16 %v642
        %v778 = vunpack.c.l.b16 %v643
        %v779 = vunpack.c.l.b16 %v644
        %v780 = vunpack.c.l.b16 %v645
        %v781 = vunpack.c.l.b16 %v646
        %v782 = vunpack.c.l.b16 %v647
        %v783 = vunpack.c.l.b16 %v648
        %v784 = vunpack.c.l.b16 %v649
        %v785 = vunpack.c.l.b16 %v650
        %v786 = vunpack.c.l.b16 %v651
        %v787 = vunpack.c.l.b16 %v652
        %v788 = vunpack.c.l.b16 %v653
        %v789 = vunpack.c.l.b16 %v654
        %v790 = vunpack.c.l.b16 %v655
        %v791 = vunpack.c.l.b16 %v656
        %v792 = vunpack.c.l.b16 %v657
        %v793 = vunpack.c.l.b16 %v658
        %v794 = vunpack.c.l.b16 %v659
        %v795 = vunpack.c.l.b16 %v660
        %v796 = vunpack.c.l.b16 %v661
        %v797 = vunpack.c.l.b16 %v662
        %v798 = vunpack.c.l.b16 %v663
        %v799 = vunpack.c.l.b16 %v664
        %v800 = vunpack.c.l.b16 %v665
        %v801 = vunpack.c.l.b16 %v666
        %v802 = vunpack.c.l.b16 %v667
        %v803 = vunpack.c.l.b16 %v668
        %v804 = vunpack.c.l.b16 %v669
        %v805 = vunpack.c.l.b16 %v670
        %v806 = vunpack.c.l.b16 %v671
        %v807 = vunpack.c.l.b16 %v672
        %v808 = vunpack.c.l.b16 %v673
        %v809 = vunpack.c.l.b16 %v674
        %v810 = vunpack.c.l.b16 %v675
        %v811 = vunpack.c.l.b16 %v676
        %v812 = vunpack.c.l.b16 %v677
        %v813 = vunpack.c.l.b16 %v678
        %v814 = vunpack.c.l.b16 %v679
        %v815 = vunpack.c.l.b16 %v680
        %v816 = vunpack.c.l.b16 %v681
        %v817 = vunpack.c.l.b16 %v682
        %v818 = vunpack.c.l.b16 %v683
        %v819 = vunpack.c.l.b16 %v684
        %v820 = vunpack.c.l.b16 %v685
        %v821 = vunpack.c.l.b16 %v686
        %v822 = vunpack.c.l.b16 %v687
        %v823 = vunpack.c.l.b16 %v688
        %v824 = vpack.c.b16 %v761, %v760
        %v825 = vpack.c.b16 %v763, %v762
        %v826 = vpack.c.b16 %v765, %v764
        %v827 = vpack.c.b16 %v767, %v766
        %v828 = vpack.c.b16 %v769, %v768
        %v829 = vpack.c.b16 %v771, %v770
        %v830 = vpack.c.b16 %v773, %v772
        %v831 = vpack.c.b16 %v775, %v774
        %v832 = vpack.c.b16 %v777, %v776
        %v833 = vpack.c.b16 %v779, %v778
        %v834 = vpack.c.b16 %v781, %v780
        %v835 = vpack.c.b16 %v783, %v782
        %v836 = vpack.c.b16 %v785, %v784
        %v837 = vpack.c.b16 %v787, %v786
        %v838 = vpack.c.b16 %v789, %v788
        %v839 = vpack.c.b16 %v791, %v790
        %v840 = vpack.c.b16 %v793, %v792
        %v841 = vpack.c.b16 %v795, %v794
        %v842 = vpack.c.b16 %v797, %v796
        %v843 = vpack.c.b16 %v799, %v798
        %v844 = vpack.c.b16 %v801, %v800
        %v845 = vpack.c.b16 %v803, %v802
        %v846 = vpack.c.b16 %v805, %v804
        %v847 = vpack.c.b16 %v807, %v806
        %v848 = vpack.c.b16 %v809, %v808
        %v849 = vpack.c.b16 %v811, %v810
        %v850 = vpack.c.b16 %v813, %v812
        %v851 = vpack.c.b16 %v815, %v814
        %v852 = vpack.c.b16 %v817, %v816
        %v853 = vpack.c.b16 %v819, %v818
        %v854 = vpack.c.b16 %v821, %v820
        %v855 = vpack.c.b16 %v823, %v822
        %888 = vmatprep.subr.bf16.mxu0 0
        %889 = vmatpush1.bf16.msra.mxu0 %v824
        %890 = vmatprep.subr.bf16.mxu0 0
        %891 = vmatpush1.bf16.msra.mxu0 %v825
        %892 = vmatprep.subr.bf16.mxu0 0
        %893 = vmatpush1.bf16.msra.mxu0 %v826
        %894 = vmatprep.subr.bf16.mxu0 0
        %895 = vmatpush1.bf16.msra.mxu0 %v827
        %896 = vmatprep.subr.bf16.mxu0 0
        %897 = vmatpush1.bf16.msra.mxu0 %v828
        %898 = vmatprep.subr.bf16.mxu0 0
        %899 = vmatpush1.bf16.msra.mxu0 %v829
        %900 = vmatprep.subr.bf16.mxu0 0
        %901 = vmatpush1.bf16.msra.mxu0 %v830
        %902 = vmatprep.subr.bf16.mxu0 0
        %903 = vmatpush1.bf16.msra.mxu0 %v831
        %904 = vmatprep.subr.bf16.mxu0 0
        %905 = vmatpush1.bf16.msra.mxu0 %v832
        %906 = vmatprep.subr.bf16.mxu0 0
        %907 = vmatpush1.bf16.msra.mxu0 %v833
        %908 = vmatprep.subr.bf16.mxu0 0
        %909 = vmatpush1.bf16.msra.mxu0 %v834
        %910 = vmatprep.subr.bf16.mxu0 0
        %911 = vmatpush1.bf16.msra.mxu0 %v835
        %912 = vmatprep.subr.bf16.mxu0 0
        %913 = vmatpush1.bf16.msra.mxu0 %v836
        %914 = vmatprep.subr.bf16.mxu0 0
        %915 = vmatpush1.bf16.msra.mxu0 %v837
        %916 = vmatprep.subr.bf16.mxu0 0
        %917 = vmatpush1.bf16.msra.mxu0 %v838
        %918 = vmatprep.subr.bf16.mxu0 0
        %919 = vmatpush1.bf16.msra.mxu0 %v839
        %920 = vmatprep.mubr.bf16.mxu0 %v618
        %921 = vmatmul.mubr.bf16.gmra.mrb[0].mxu0 %v617
        %v922 = vpop.f32.mrb[0].mxu0
        %v923 = vadd.f32 %v694, %v922
        %v924 = vpop.f32.mrb[0].mxu0
        %v925 = vpop.f32.mrb[0].mxu0
        %v926 = vadd.f32 %v694, %v925
        %v927 = vpop.f32.mrb[0].mxu0
        %928 = vmatprep.mubr.bf16.mxu0 %v622
        %929 = vmatmul.mubr.bf16.gmra.mrb[0].mxu0 %v621
        %v930 = vpop.f32.mrb[0].mxu0
        %v931 = vadd.f32 %v694, %v930
        %v932 = vpop.f32.mrb[0].mxu0
        %v933 = vpop.f32.mrb[0].mxu0
        %v934 = vadd.f32 %v694, %v933
        %v935 = vpop.f32.mrb[0].mxu0
        %936 = vdwg.mxu0
        %937 = vmatprep.subr.bf16.mxu0 0
        %938 = vmatpush1.bf16.msra.mxu0 %v840
        %939 = vmatprep.subr.bf16.mxu0 0
        %940 = vmatpush1.bf16.msra.mxu0 %v841
        %941 = vmatprep.subr.bf16.mxu0 0
        %942 = vmatpush1.bf16.msra.mxu0 %v842
        %943 = vmatprep.subr.bf16.mxu0 0
        %944 = vmatpush1.bf16.msra.mxu0 %v843
        %945 = vmatprep.subr.bf16.mxu0 0
        %946 = vmatpush1.bf16.msra.mxu0 %v844
        %947 = vmatprep.subr.bf16.mxu0 0
        %948 = vmatpush1.bf16.msra.mxu0 %v845
        %949 = vmatprep.subr.bf16.mxu0 0
        %950 = vmatpush1.bf16.msra.mxu0 %v846
        %951 = vmatprep.subr.bf16.mxu0 0
        %952 = vmatpush1.bf16.msra.mxu0 %v847
        %953 = vmatprep.subr.bf16.mxu0 0
        %954 = vmatpush1.bf16.msra.mxu0 %v848
        %955 = vmatprep.subr.bf16.mxu0 0
        %956 = vmatpush1.bf16.msra.mxu0 %v849
        %957 = vmatprep.subr.bf16.mxu0 0
        %958 = vmatpush1.bf16.msra.mxu0 %v850
        %959 = vmatprep.subr.bf16.mxu0 0
        %960 = vmatpush1.bf16.msra.mxu0 %v851
        %961 = vmatprep.subr.bf16.mxu0 0
        %962 = vmatpush1.bf16.msra.mxu0 %v852
        %963 = vmatprep.subr.bf16.mxu0 0
        %964 = vmatpush1.bf16.msra.mxu0 %v853
        %965 = vmatprep.subr.bf16.mxu0 0
        %966 = vmatpush1.bf16.msra.mxu0 %v854
        %967 = vmatprep.subr.bf16.mxu0 0
        %968 = vmatpush1.bf16.msra.mxu0 %v855
        %969 = vmatprep.mubr.bf16.mxu0 %v620
        %970 = vmatmul.mubr.bf16.gmra.mrb[0].mxu0 %v619
        %v971 = vpop.f32.mrb[0].mxu0
        %v972 = vadd.f32 %v923, %v971
        %v973 = vpop.f32.mrb[0].mxu0
        %v974 = vpop.f32.mrb[0].mxu0
        %v975 = vadd.f32 %v926, %v974
        %v976 = vpop.f32.mrb[0].mxu0
        %977 = vmatprep.mubr.bf16.mxu0 %v624
        %978 = vmatmul.mubr.bf16.gmra.mrb[0].mxu0 %v623
        %v979 = vpop.f32.mrb[0].mxu0
        %v980 = vadd.f32 %v931, %v979
        %v981 = vpop.f32.mrb[0].mxu0
        %v982 = vpop.f32.mrb[0].mxu0
        %v983 = vadd.f32 %v934, %v982
        %v984 = vpop.f32.mrb[0].mxu0
        %985 = vdwg.mxu0
        %986 = vst [vmem:[%s271] sm:$0xff] %v972
        %987 = vst [vmem:[%s271 + $0x8] sm:$0xff] %v975
        %988 = vst [vmem:[%s271 + $0x10] sm:$0xff] %v980
        %989 = vst [vmem:[%s271 + $0x18] sm:$0xff] %v983
        %s990 = sand.u32 %s141, 1
        %s991 = scalar_lea.sflag [#allocation4], %s990
        %s992 = sand.u32 %s141, 1
        %s993 = smul.addr %s992, 32
        %s994 = scalar_lea.vmem [#allocation8], %s993
        // Predicated region
        $region53: #{tpu_custom_call.1} parent=39 // pred_check
          %p995 = pneg %p151
        $region54: #{tpu_custom_call.1} parent=39 // pred_check_branch
          %997 = sbr.rel (%p995) target = $region56
        $region55: #{tpu_custom_call.1} parent=39 // pred_region
          %s998 = smul.u32 4, %s23
          %s1000 = ssub.s32 512, 512
          %1001 = vsyncadd %s991, %s1000
          %s1002 = smul.addr %s998, 128
          %s1003 = scalar_lea.hbm %s5, %s1002
          %s1004 = sshll.u32 %s994, 4
          %s1005 = int_to_ptr.vmem [resolvable:$true] %s1004
          %1010 = dma.vmem_to_hbm [thread:$0]  %s1005, 512, %s1003, %s991, 128, 128, 8
        $region56: #{tpu_custom_call.1} parent=39 // pred_fallthru
          _
      $region40: #{tpu_custom_call.1} parent=5 // pred_fallthru
        _
      %p1011 = scmp.le.s32.totalorder 2, %s18
      // Predicated region
      $region57: #{tpu_custom_call.1} parent=5 // pred_check
        %p1012 = pneg %p1011
      $region58: #{tpu_custom_call.1} parent=5 // pred_check_branch
        %1014 = sbr.rel (%p1012) target = $region60
      $region59: #{tpu_custom_call.1} parent=5 // pred_region
        %s1015 = ssub.s32 %s18, 2
        // Predicated region
        $region61: #{tpu_custom_call.1} parent=59 // pred_check
          %p1016 = pneg %p157
        $region62: #{tpu_custom_call.1} parent=59 // pred_check_branch
          %1018 = sbr.rel (%p1016) target = $region64
        $region63: #{tpu_custom_call.1} parent=59 // pred_region
          %s1019 = sand.u32 %s142, 1
          %s1020 = scalar_lea.sflag [#allocation4], %s1019
          %s1021 = sand.u32 %s142, 1
          %s1022 = smul.addr %s1021, 32
          %s1023 = scalar_lea.vmem [#allocation8], %s1022
          %1024 = dma.done %s1020, 512
        $region64: #{tpu_custom_call.1} parent=59 // pred_fallthru
          _
      $region60: #{tpu_custom_call.1} parent=5 // pred_fallthru
        _
    $region6: #{tpu_custom_call.1} parent=1 // loop_footer
      %s22 = sadd.s32 1, %s18
    $region7: #{tpu_custom_call.1} parent=1 // loop_footer_branch
      %17 = sbr.rel target = $region3
    $region8: #{tpu_custom_call.1} parent=1 // loop_exit
      _
    %1025 = vsyncpa [#allocation3], 1
    %s1026 = scalar_lea.sflag [#allocation3], 1
    %1027 = vsyncpa %s1026, 1
    %1028 = vsyncpa [#allocation6], 1
    %1029 = vsyncpa [#allocation4], 1
    %s1030 = scalar_lea.sflag [#allocation4], 1
    %1031 = vsyncpa %s1030, 1

</llo_original>
